<compile_context>
chip_gen: v7x
topology: tpu7x:2x2x1
jax: 0.10.0
libtpu: 0.0.40
codegen_flags: <defaults>
</compile_context>

<pallas_src>
import numpy as np
import jax
import jax.numpy as jnp
from jax.experimental import pallas as pl
from jax.experimental.pallas import tpu as pltpu


_LANES = 128                      # vreg lane width
_TN_AGG = 256                     # contraction-row tile of the aggregation matmul
_VMEM_LIMIT = 32 * 1024 * 1024    # raises v5e's 16 MiB default scoped VMEM; == default on v6e/v7x


def _round_up(v, m):
    return ((v + m - 1) // m) * m


def _cdiv(a, b):
    return (a + b - 1) // b


def _pick_tk():
    """Cluster-row (MXU LHS sublane) tile: 128 on v5e (128x128 MXU), 256 on v6e/v7x."""
    kind = ""
    try:
        kind = jax.devices()[0].device_kind.lower()
    except Exception:
        pass
    if "v5 lite" in kind or "v5lite" in kind or "v5e" in kind:
        return 128
    return 256


def _choose_proj_rows(n_nodes, c_pad):
    """Node-projection row tile: as large as a ~4 MiB/buffer budget allows (<=2048)."""
    budget_rows = (4 * 1024 * 1024) // (4 * c_pad)
    budget_rows = max(256, min(2048, (budget_rows // 256) * 256))
    if n_nodes <= budget_rows:
        return _round_up(max(n_nodes, 1), 8)
    return budget_rows


def _choose_score_rows(n_edges):
    """Edge-score (rows, 128) tiling: one block when small, 1024-row tiles otherwise."""
    rows_needed = max(_cdiv(n_edges, _LANES), 1)
    if rows_needed <= 1024:
        rows = _round_up(rows_needed, 8)
        return rows, rows                      # single grid step
    rows = _round_up(rows_needed, 1024)
    return rows, 1024


# ----------------------------- Pallas kernels ------------------------------

def _node_proj_kernel(x_ref, w_ref, out_ref):
    # x: (TN, Cp) f32, w: (8, Cp) f32 (row 0 = w_src, row 1 = w_dst), out: (TN, 2).
    # VPU multiply + lane reduction instead of a width-1/2 MXU matvec.
    x = x_ref[...]
    ps = jnp.sum(x * w_ref[0:1, :], axis=-1, keepdims=True)     # (TN, 1)
    pd = jnp.sum(x * w_ref[1:2, :], axis=-1, keepdims=True)     # (TN, 1)
    out_ref[...] = jnp.concatenate([ps, pd], axis=-1)           # (TN, 2)


def node_projection(x_pad, w2, tn):
    n_pad, c_pad = x_pad.shape
    return pl.pallas_call(
        _node_proj_kernel,
        out_shape=jax.ShapeDtypeStruct((n_pad, 2), jnp.float32),
        grid=(n_pad // tn,),
        in_specs=[
            pl.BlockSpec((tn, c_pad), lambda i: (i, 0)),
            # constant block index -> weight stays resident, no re-DMA per tile
            pl.BlockSpec((8, c_pad), lambda i: (0, 0)),
        ],
        out_specs=pl.BlockSpec((tn, 2), lambda i: (i, 0)),
        compiler_params=pltpu.CompilerParams(
            dimension_semantics=("parallel",),
            vmem_limit_bytes=_VMEM_LIMIT),
    )(x_pad, w2)


def _edge_score_kernel(gs_ref, gd_ref, b_ref, out_ref):
    # gs/gd/out: (TR, 128) lane-dense tiles; b: (1, 1) scalar in SMEM.
    out_ref[...] = jnp.tanh(gs_ref[...] + gd_ref[...] + b_ref[0, 0]) + 0.5


def edge_scores(gs2d, gd2d, b2d, tr):
    r, lanes = gs2d.shape
    return pl.pallas_call(
        _edge_score_kernel,
        out_shape=jax.ShapeDtypeStruct((r, lanes), jnp.float32),
        grid=(r // tr,),
        in_specs=[
            pl.BlockSpec((tr, lanes), lambda i: (i, 0)),
            pl.BlockSpec((tr, lanes), lambda i: (i, 0)),
            pl.BlockSpec(memory_space=pltpu.MemorySpace.SMEM),   # scalar bias
        ],
        out_specs=pl.BlockSpec((tr, lanes), lambda i: (i, 0)),
        compiler_params=pltpu.CompilerParams(
            dimension_semantics=("parallel",),
            vmem_limit_bytes=_VMEM_LIMIT),
    )(gs2d, gd2d, b2d)


def _cluster_agg_kernel(ns_ref, cl_ref, x_ref, sc_ref, out_ref, acc_ref):
    # ns: (k_tiles,) i32 scalar-prefetched N-tile starts (consumed by index_maps),
    # cl: (1, TN) i32 sorted cluster ids (padding = -1), x: (TN, Cp) bf16,
    # sc: (TK, 1) f32 per-cluster score, out: (TK, Cp) f32, acc: (TK, Cp) f32.
    j = pl.program_id(1)

    @pl.when(j == 0)
    def _():
        acc_ref[...] = jnp.zeros_like(acc_ref)

    tk = acc_ref.shape[0]
    k0 = pl.program_id(0) * tk
    # (TK, 1) column iota of cluster ids owned by this K tile — cheap; never a
    # full (TK, TN) int32 tile.  Pure 0/1 one-hot selected directly into bf16
    # (exact in bf16), so the bf16 MXU matmul only rounds x itself.
    col = jax.lax.broadcasted_iota(jnp.int32, (tk, 1), 0) + k0
    onehot = jnp.where(col == cl_ref[...],
                       jnp.ones((), jnp.bfloat16), jnp.zeros((), jnp.bfloat16))
    acc_ref[...] += jnp.dot(onehot, x_ref[...],
                            preferred_element_type=jnp.float32)

    @pl.when(j == pl.num_programs(1) - 1)
    def _():
        # per-cluster score applied once at finalize (kept out of the LHS)
        out_ref[...] = (acc_ref[...] * sc_ref[...]).astype(out_ref.dtype)


def cluster_aggregate(nstart, cl2d, xs_pad, score_col, *, tk, tn, j_steps):
    n_pad, c_pad = xs_pad.shape
    k_pad = score_col.shape[0]
    # TODO(synk): on v7x, tile the feature dim (extra parallel C axis) once
    # c_pad exceeds a few K so the resident bytes stay within 64 MiB VMEM and
    # both TensorCores get work even when k_pad // tk == 1.
    return pl.pallas_call(
        _cluster_agg_kernel,
        out_shape=jax.ShapeDtypeStruct((k_pad, c_pad), jnp.float32),
        grid_spec=pltpu.PrefetchScalarGridSpec(
            num_scalar_prefetch=1,
            grid=(k_pad // tk, j_steps),                  # reduction (node) axis last
            in_specs=[
                pl.BlockSpec((1, tn), lambda k, j, ns: (0, ns[k] + j)),
                pl.BlockSpec((tn, c_pad), lambda k, j, ns: (ns[k] + j, 0)),
                pl.BlockSpec((tk, 1), lambda k, j, ns: (k, 0)),
            ],
            out_specs=pl.BlockSpec((tk, c_pad), lambda k, j, ns: (k, 0)),
            scratch_shapes=[pltpu.VMEM((tk, c_pad), jnp.float32)],
        ),
        compiler_params=pltpu.CompilerParams(
            dimension_semantics=("parallel", "arbitrary"),
            vmem_limit_bytes=_VMEM_LIMIT),
    )(nstart, cl2d, xs_pad, score_col)


# ------------------------------- host glue ---------------------------------

def _merge_edges_host(e_np, ei_np, n_nodes):
    # TODO(synk): inherently sequential, data-dependent greedy matching — stays
    # on the host exactly like the reference module's CPU loop.
    nodes_remaining = set(range(n_nodes))
    cluster = np.empty(n_nodes, dtype=np.int32)
    order = np.argsort(-e_np, kind="stable")
    i = 0
    new_edge_indices = []
    for edge_idx in order.tolist():
        s_ = int(ei_np[0, edge_idx])
        if s_ not in nodes_remaining:
            continue
        t_ = int(ei_np[1, edge_idx])
        if t_ not in nodes_remaining:
            continue
        new_edge_indices.append(edge_idx)
        cluster[s_] = i
        nodes_remaining.remove(s_)
        if s_ != t_:
            cluster[t_] = i
            nodes_remaining.remove(t_)
        i += 1
    for node_idx in sorted(nodes_remaining):
        cluster[node_idx] = i
        i += 1
    return cluster, i, new_edge_indices, len(nodes_remaining)


# ------------------------------- forward pass ------------------------------

def edge_pooling_forward(x, edge_index, batch, w, b, return_aux=False):
    """Mirrors EdgePooling.forward: returns (new_x, new_edge_index, 0, new_batch, 0)."""
    n_nodes, c = x.shape
    n_edges = edge_index.shape[1]

    c_pad = _round_up(c, _LANES)
    x_f32 = x.astype(jnp.float32)

    # ---- Kernel 1: node projection (big row tiles, HBM-BW bound) ----
    tn_proj = _choose_proj_rows(n_nodes, c_pad)
    n_padP = _round_up(n_nodes, tn_proj)
    x_padP = jnp.pad(x_f32, ((0, n_padP - n_nodes), (0, c_pad - c)))

    # Split Linear(2C -> 1) weight into src/dst halves: x is read once (N*C)
    # instead of building the (E, 2C) gathered edge-feature matrix.
    w = jnp.asarray(w, jnp.float32).reshape(2 * c, 1)
    w2 = (jnp.zeros((8, c_pad), jnp.float32)
          .at[0, :c].set(w[:c, 0])
          .at[1, :c].set(w[c:, 0]))

    proj = node_projection(x_padP, w2, tn_proj)              # (n_padP, 2)
    # TODO(synk): for E >> N, fuse this gather into the score kernel (pass proj
    # + edge_index tiles, gather in-kernel) to avoid the HBM round-trip of gs/gd.
    gs = proj[:n_nodes, 0][edge_index[0]]                    # (E,)
    gd = proj[:n_nodes, 1][edge_index[1]]                    # (E,)

    # ---- Kernel 2: edge-score finalize, lane-dense (rows, 128) layout ----
    score_rows, tr = _choose_score_rows(n_edges)
    e_pad = score_rows * _LANES
    gs2d = jnp.pad(gs, (0, e_pad - n_edges)).reshape(score_rows, _LANES)
    gd2d = jnp.pad(gd, (0, e_pad - n_edges)).reshape(score_rows, _LANES)
    b2d = jnp.asarray(b, jnp.float32).reshape(1, 1)

    e = edge_scores(gs2d, gd2d, b2d, tr).reshape(-1)[:n_edges]   # (E,)

    # --- __merge_edges__ greedy matching (host) ---
    e_np = np.asarray(e)
    ei_np = np.asarray(edge_index)
    batch_np = np.asarray(batch)
    cluster, k, new_edge_indices, n_single = _merge_edges_host(e_np, ei_np, n_nodes)

    new_edge_score = e_np[new_edge_indices].astype(np.float32)
    if n_single > 0:
        new_edge_score = np.concatenate(
            [new_edge_score, np.ones(k - len(new_edge_indices), dtype=np.float32)])

    # ---- Kernel 3: block-sparse scatter_add + score scaling ----
    tk = _pick_tk()
    tn = _TN_AGG
    k_pad = _round_up(k, tk)
    n_padA = _round_up(max(n_nodes, 1), tn)

    # Sort nodes by cluster id so each K tile touches a contiguous node range.
    perm = np.argsort(cluster, kind="stable")
    cluster_sorted = cluster[perm].astype(np.int64)

    cl2d = np.full((1, n_padA), -1, dtype=np.int32)
    cl2d[0, :n_nodes] = cluster_sorted

    xs = x_f32[jnp.asarray(perm, dtype=jnp.int32)]
    xs_pad = jnp.pad(xs, ((0, n_padA - n_nodes), (0, c_pad - c))).astype(jnp.bfloat16)

    score_col = np.zeros((k_pad, 1), dtype=np.float32)       # per-cluster score column
    score_col[:k, 0] = new_edge_score

    # Per-K-tile node-tile starts (scalar-prefetched). Each cluster holds <=2
    # nodes, so each K tile needs only a couple of N tiles -> O(N*C) total work.
    n_tiles = n_padA // tn
    k_tiles = k_pad // tk
    kt = np.arange(k_tiles, dtype=np.int64)
    starts = np.searchsorted(cluster_sorted, kt * tk, side="left")
    ends = np.searchsorted(cluster_sorted, (kt + 1) * tk, side="left")
    tile_start = starts // tn
    tile_cnt = np.where(ends > starts, (ends + tn - 1) // tn - tile_start, 1)
    j_steps = int(max(int(tile_cnt.max()), 1))
    nstart = np.clip(tile_start, 0, n_tiles - j_steps).astype(np.int32)

    agg = cluster_aggregate(jnp.asarray(nstart), jnp.asarray(cl2d), xs_pad,
                            jnp.asarray(score_col), tk=tk, tn=tn, j_steps=j_steps)
    new_x = agg[:k, :c]

    # --- coalesce(cluster[edge_index]): sort + dedup (host glue) ---
    ne = cluster[ei_np]
    flat = ne[0].astype(np.int64) * k + ne[1].astype(np.int64)
    uniq = np.unique(flat)
    new_edge_index = np.stack([uniq // k, uniq % k]).astype(np.int32)

    # --- new_batch = scatter(cluster, batch) ---
    new_batch = np.empty(k, dtype=np.int32)
    new_batch[cluster] = batch_np

    out = (new_x, jnp.asarray(new_edge_index), 0, jnp.asarray(new_batch), 0)
    if return_aux:
        aux = {"edge_score": e, "cluster": cluster, "new_edge_score": new_edge_score}
        return out, aux
    return out


# ---------------------------------- main -----------------------------------

if __name__ == "__main__":
    key = jax.random.PRNGKey(0)
    in_channels = 4
    n_nodes, n_edges = 8, 12

    k_x, k_w, k_b = jax.random.split(key, 3)
    x = jax.random.normal(k_x, (n_nodes, in_channels), dtype=jnp.float32)

    # deterministic small graph (ring + a few chords)
    src = jnp.array([0, 1, 2, 3, 4, 5, 6, 7, 0, 2, 4, 6], dtype=jnp.int32)
    dst = jnp.array([1, 2, 3, 4, 5, 6, 7, 0, 3, 5, 1, 2], dtype=jnp.int32)
    edge_index = jnp.stack([src, dst])
    batch = jnp.zeros((n_nodes,), dtype=jnp.int32)

    # Linear(2*in_channels, 1) parameters, deterministic init
    w = jax.random.normal(k_w, (2 * in_channels, 1), dtype=jnp.float32) * 0.1
    b = jax.random.normal(k_b, (1, 1), dtype=jnp.float32) * 0.1

    (new_x, new_edge_index, t1, new_batch, t2), aux = edge_pooling_forward(
        x, edge_index, batch, w, b, return_aux=True)
    jax.block_until_ready(new_x)

    # --- lightweight numpy reference check of the Pallas paths ---
    x_np = np.asarray(x, np.float32)
    w_np = np.asarray(w, np.float32)
    b_np = float(np.asarray(b).reshape(-1)[0])
    ei_np = np.asarray(edge_index)
    e_ref = np.tanh(
        np.concatenate([x_np[ei_np[0]], x_np[ei_np[1]]], axis=-1) @ w_np[:, 0] + b_np
    ) + 0.5
    np.testing.assert_allclose(np.asarray(aux["edge_score"]), e_ref,
                               rtol=1e-3, atol=1e-3)

    cluster = aux["cluster"]
    scores = aux["new_edge_score"]
    k_clusters = new_x.shape[0]
    agg_ref = np.zeros((k_clusters, in_channels), np.float32)
    np.add.at(agg_ref, cluster, x_np)
    new_x_ref = agg_ref * scores[:, None]
    # bf16 rounding of x in the MXU matmul (f32 accumulate) -> 2e-2 tolerance
    np.testing.assert_allclose(np.asarray(new_x), new_x_ref, rtol=2e-2, atol=2e-2)

    print("KERNEL_OK")
</pallas_src>

<mosaic_0001>
module attributes {stable_mosaic.version = 11 : i64} {
  func.func @_node_proj_kernel(%arg0: i32, %arg1: memref<8x128xf32, #tpu.memory_space<vmem>>, %arg2: memref<8x128xf32, #tpu.memory_space<vmem>>, %arg3: memref<8x2xf32, #tpu.memory_space<vmem>>) attributes {dimension_semantics = [#tpu.dimension_semantics<parallel>], iteration_bounds = array<i64: 1>, scalar_prefetch = 0 : i64, scratch_operands = 0 : i64, tpu.core_type = #tpu.core_type<tc>, window_params = [{transform_indices = @transform_0, window_bounds = array<i64: 8, 128>}, {pipeline_mode = #tpu.pipeline_mode<synchronous>, transform_indices = @transform_1, window_bounds = array<i64: 8, 128>}, {transform_indices = @transform_2, window_bounds = array<i64: 8, 2>}]} {
    %c0 = arith.constant 0 : index
    %c0_0 = arith.constant 0 : index
    %0 = vector.load %arg1[%c0, %c0_0] : memref<8x128xf32, #tpu.memory_space<vmem>>, vector<8x128xf32>
    %c0_1 = arith.constant 0 : index
    %c0_2 = arith.constant 0 : index
    %1 = vector.load %arg2[%c0_1, %c0_2] : memref<8x128xf32, #tpu.memory_space<vmem>>, vector<1x128xf32>
    %2 = vector.broadcast %1 : vector<1x128xf32> to vector<8x128xf32>
    %3 = arith.mulf %0, %2 : vector<8x128xf32>
    %cst = arith.constant dense<0.000000e+00> : vector<8xf32>
    %4 = vector.multi_reduction <add>, %3, %cst [1] : vector<8x128xf32> to vector<8xf32>
    %5 = vector.shape_cast %4 : vector<8xf32> to vector<8x1xf32>
    %c1 = arith.constant 1 : index
    %c0_3 = arith.constant 0 : index
    %6 = vector.load %arg2[%c1, %c0_3] : memref<8x128xf32, #tpu.memory_space<vmem>>, vector<1x128xf32>
    %7 = vector.broadcast %6 : vector<1x128xf32> to vector<8x128xf32>
    %8 = arith.mulf %0, %7 : vector<8x128xf32>
    %cst_4 = arith.constant dense<0.000000e+00> : vector<8xf32>
    %9 = vector.multi_reduction <add>, %8, %cst_4 [1] : vector<8x128xf32> to vector<8xf32>
    %10 = vector.shape_cast %9 : vector<8xf32> to vector<8x1xf32>
    %11 = tpu.concatenate %5, %10 in 1 : vector<8x1xf32>, vector<8x1xf32> -> vector<8x2xf32>
    %c0_5 = arith.constant 0 : index
    %c0_6 = arith.constant 0 : index
    %12 = vector.load %arg3[%c0_5, %c0_6] : memref<8x2xf32, #tpu.memory_space<vmem>>, vector<8x2xf32>
    tpu.vector_store %arg3[%c0_5, %c0_6], %11 {strides = array<i32>} : memref<8x2xf32, #tpu.memory_space<vmem>>, vector<8x2xf32>,
    return
  }
  func.func @transform_0(%arg0: i32) -> (i32, i32) {
    %c0_i32 = arith.constant 0 : i32
    %c0_i32_0 = arith.constant 0 : i32
    return %arg0, %c0_i32 : i32, i32
  }
  func.func @transform_1(%arg0: i32) -> (i32, i32) {
    %c0_i32 = arith.constant 0 : i32
    %c0_i32_0 = arith.constant 0 : i32
    %c0_i32_1 = arith.constant 0 : i32
    return %c0_i32, %c0_i32_0 : i32, i32
  }
  func.func @transform_2(%arg0: i32) -> (i32, i32) {
    %c0_i32 = arith.constant 0 : i32
    %c0_i32_0 = arith.constant 0 : i32
    return %arg0, %c0_i32 : i32, i32
  }
}

</mosaic_0001>

<llo_original>
// kernel: tpu_custom_call.1
$region0: #{tpu_custom_call.1}
  #allocation0 [shape = 'u32[]', space=smem, size = 0x4, offset = 0x4, fixed_abs, tag = 'smem constant byte address 0x4 - core index']
  #allocation1 [shape = 'u32[144,128]{1,0:T(1,128)}', space=vmem, size = 0x12000, scoped, tag = 'internal scratch']
  %s0 = inlined_call_operand.hbm [shape: f32[8,128], index: 0, kind: input, shape index: {}]
  %s1 = inlined_call_operand.hbm [shape: f32[8,128], index: 1, kind: input, shape index: {}]
  %s2 = inlined_call_operand.vmem [shape: f32[8,2], index: 2, kind: output, shape index: {}]
  %s3 = sld [smem:[#allocation0]]
  $region26: #{tpu_custom_call.1} parent=0
    _
  %s5 = ssub.s32 1, %s3
  %s6 = scalar_select 0, %s5, %s3
  $region1: #{tpu_custom_call.1} parent=0
    #allocation2 [shape = 'u8[4096]{0}', space=vmem, size = 0x1000, scoped, tag = 'input window, operand 0, single buffered']
    #allocation3 [shape = 's32[1]{0}', space=sflag, size = 0x4, scoped, tag = 'scoped memory for tpu_custom_call.1']
    #allocation4 [shape = 'u8[4096]{0}', space=vmem, size = 0x1000, scoped, tag = 'input window, operand 1, single buffered']
    #allocation5 [shape = 's32[1]{0}', space=sflag, size = 0x4, scoped, tag = 'scoped memory for tpu_custom_call.1']
    %7 = vsyncpa [#allocation3], 0
    %8 = vsyncpa [#allocation5], 0
    // Predicated region
    $region2: #{tpu_custom_call.1} parent=1 // pred_check
      _
    $region3: #{tpu_custom_call.1} parent=1 // pred_check_branch
      %10 = sbr.rel (0) target = $region5
    $region4: #{tpu_custom_call.1} parent=1 // pred_region
      %s12 = ssub.s32 128, 128
      %13 = vsyncadd [#allocation3], %s12
      %s15 = sshll.u32 [#allocation2], 4
      %s16 = int_to_ptr.vmem [resolvable:$true] %s15
      %18 = dma.hbm_to_vmem [thread:$0]  %s0, 128, %s16, [#allocation3]
    $region5: #{tpu_custom_call.1} parent=1 // pred_fallthru
      _
    // Predicated region
    $region6: #{tpu_custom_call.1} parent=1 // pred_check
      _
    $region7: #{tpu_custom_call.1} parent=1 // pred_check_branch
      %20 = sbr.rel (0) target = $region9
    $region8: #{tpu_custom_call.1} parent=1 // pred_region
      %s22 = ssub.s32 128, 128
      %23 = vsyncadd [#allocation5], %s22
      %s25 = sshll.u32 [#allocation4], 4
      %s26 = int_to_ptr.vmem [resolvable:$true] %s25
      %28 = dma.hbm_to_vmem [thread:$0]  %s1, 128, %s26, [#allocation5]
    $region9: #{tpu_custom_call.1} parent=1 // pred_fallthru
      _
    // Predicated region
    $region10: #{tpu_custom_call.1} parent=1 // pred_check
      _
    $region11: #{tpu_custom_call.1} parent=1 // pred_check_branch
      %30 = sbr.rel (0) target = $region13
    $region12: #{tpu_custom_call.1} parent=1 // pred_region
      %31 = dma.done [#allocation3], 128
    $region13: #{tpu_custom_call.1} parent=1 // pred_fallthru
      _
    // Predicated region
    $region14: #{tpu_custom_call.1} parent=1 // pred_check
      _
    $region15: #{tpu_custom_call.1} parent=1 // pred_check_branch
      %33 = sbr.rel (0) target = $region17
    $region16: #{tpu_custom_call.1} parent=1 // pred_region
      %34 = dma.done [#allocation5], 128
    $region17: #{tpu_custom_call.1} parent=1 // pred_fallthru
      _
    %v35 = vld [vmem:[#allocation2] sm:$0xff]
    %v36 = vld [vmem:[#allocation4] sm:$0x1]
    %v37 = vlaneseq
    %v38 = vshrl.u32 %v37, 7
    %v39 = vsub.s32 0, %v38
    %v40 = vrot.slane %v36, %v39
    %v41 = vmul.f32 %v35, %v40
    %42 = vadd.xlane.f32.xlu0 %v41
    %v43 = vpop.xlane.xlu0 %42
    %v44 = vld [vmem:[#allocation4 + $0x1] sm:$0x1]
    %v45 = vlaneseq
    %v46 = vshrl.u32 %v45, 7
    %v47 = vsub.s32 0, %v46
    %v48 = vrot.slane %v44, %v47
    %v49 = vmul.f32 %v35, %v48
    %50 = vadd.xlane.f32.xlu0 %v49
    %v51 = vpop.xlane.xlu0 %50
    %vm52 = vcmask 7168
    %v53 = vsel %vm52, %v43, %v51
    %vm54 = vcmask 15360
    %55 = vst.msk [vmem:[%s2] sm:$0xff] %vm54, %v53
    // Predicated region
    $region18: #{tpu_custom_call.1} parent=1 // pred_check
      _
    $region19: #{tpu_custom_call.1} parent=1 // pred_check_branch
      %57 = sbr.rel (0) target = $region21
    $region20: #{tpu_custom_call.1} parent=1 // pred_region
      _
    $region21: #{tpu_custom_call.1} parent=1 // pred_fallthru
      _
    // Predicated region
    $region22: #{tpu_custom_call.1} parent=1 // pred_check
      _
    $region23: #{tpu_custom_call.1} parent=1 // pred_check_branch
      %59 = sbr.rel (0) target = $region25
    $region24: #{tpu_custom_call.1} parent=1 // pred_region
      _
    $region25: #{tpu_custom_call.1} parent=1 // pred_fallthru
      _
    %60 = vsyncpa [#allocation3], 1
    %61 = vsyncpa [#allocation5], 1

</llo_original>
